<compile_context>
chip_gen: v5e
topology: v5e:2x2
jax: 0.10.0
libtpu: 0.0.40
codegen_flags: <defaults>
</compile_context>

<pallas_src>
import functools

import jax
import jax.numpy as jnp
from jax.experimental import pallas as pl
from jax.experimental.pallas import tpu as pltpu

_LANE = 128
_SUB = 8


def _ceil_to(x: int, m: int) -> int:
    return -(-x // m) * m


def _make_mask_iou_kernel(nm: int, tk: int, need_tail_mask: bool):
    """Grid = (batch_blocks, nm_chunks).  m*_ref: (bt, tk) lane-dense tiles."""

    def kernel(m1_ref, m2_ref, iou_ref, s_acc, i_acc):
        k = pl.program_id(1)

        @pl.when(k == 0)
        def _init():
            s_acc[...] = jnp.zeros_like(s_acc)
            i_acc[...] = jnp.zeros_like(i_acc)

        m1 = m1_ref[...].astype(jnp.float32)
        m2 = m2_ref[...].astype(jnp.float32)

        if need_tail_mask:
            # Partial tail chunk along N*M: zero out-of-range lanes (garbage
            # from the padded DMA block) before reducing.  Mask is built from
            # the *un-padded* NM.  Cheap VALU work on a mem-bound kernel.
            col = jax.lax.broadcasted_iota(jnp.int32, m1.shape, 1) + k * tk
            keep = col < nm
            m1 = jnp.where(keep, m1, 0.0)
            m2 = jnp.where(keep, m2, 0.0)

        # Two reductions instead of three: union = (area1 + area2) - inter.
        s_acc[...] += jnp.sum(m1 + m2, axis=1, keepdims=True)   # (bt, 1)
        i_acc[...] += jnp.sum(m1 * m2, axis=1, keepdims=True)   # (bt, 1)

        @pl.when(k == pl.num_programs(1) - 1)
        def _finalize():
            inter = i_acc[...]
            union = s_acc[...] - inter
            # Exact divide: 0/0 -> NaN, matching PyTorch; NaN fails `iou > esp`.
            iou_ref[...] = inter / union

    return kernel


def mask_iou_pallas(mask1: jax.Array, mask2: jax.Array,
                    *, vmem_budget_bytes: int = 8 * 1024 * 1024) -> jax.Array:
    """Per-batch mask IoU.  mask1, mask2: [B, N, M].  Returns iou: [B] float32."""
    assert mask1.shape == mask2.shape and mask1.ndim == 3
    B, N, M = mask1.shape
    NM = N * M

    itemsize = max(jnp.dtype(mask1.dtype).itemsize, jnp.dtype(mask2.dtype).itemsize)
    # Working-set bytes per tile element: 2 inputs x 2 pipeline buffers at the
    # input dtype + ~3 full-block f32 temporaries (casts, m1+m2, m1*m2).
    bytes_per_elem = 4 * itemsize + 3 * 4

    bt_floor = B if B < _SUB else _SUB

    # ---- lane-dim tile (tk) -------------------------------------------------
    if NM <= _LANE or bt_floor * NM * bytes_per_elem <= vmem_budget_bytes:
        # Whole row in one chunk: block dim == full array dim, so the 128-
        # divisibility rule does not apply and no HBM padding copy is needed.
        tk = NM
    else:
        tk = max(_LANE,
                 (vmem_budget_bytes // (bt_floor * bytes_per_elem)) // _LANE * _LANE)
        tk = min(tk, (NM // _LANE) * _LANE)
    num_k = -(-NM // tk)
    need_tail_mask = (NM % tk) != 0

    # ---- batch tile (bt) ----------------------------------------------------
    if B <= _SUB:
        bt = B                                  # block dim == full dim -> legal
    else:
        row_bytes = tk * bytes_per_elem
        bt_budget = max(_SUB, min(1024,
                                  (vmem_budget_bytes // row_bytes) // _SUB * _SUB))
        n_blk = max(1, -(-B // bt_budget))
        if n_blk == 1:
            n_blk = 2       # keep >= 2 (balanced) batch blocks: both TCs on v7x
        bt = _ceil_to(-(-B // n_blk), _SUB)
    num_b = -(-B // bt)

    m1 = mask1.reshape(B, NM)
    m2 = mask2.reshape(B, NM)

    kernel = _make_mask_iou_kernel(NM, tk, need_tail_mask)
    # Raise the scoped-VMEM limit when a big budget is requested (v5e default
    # is only 16 MiB); stay <= 32 MiB so it is also valid on v7x (64 MiB phys).
    vmem_limit = int(min(32 * 1024 * 1024,
                         max(16 * 1024 * 1024, 2 * vmem_budget_bytes)))

    iou = pl.pallas_call(
        kernel,
        out_shape=jax.ShapeDtypeStruct((B, 1), jnp.float32),
        grid=(num_b, num_k),
        in_specs=[
            pl.BlockSpec((bt, tk), lambda b, k: (b, k)),
            pl.BlockSpec((bt, tk), lambda b, k: (b, k)),
        ],
        # Output block depends only on the batch axis -> resident across k.
        out_specs=pl.BlockSpec((bt, 1), lambda b, k: (b, 0)),
        scratch_shapes=[
            pltpu.VMEM((bt, 1), jnp.float32),   # sum(m1) + sum(m2) accumulator
            pltpu.VMEM((bt, 1), jnp.float32),   # intersection accumulator
        ],
        compiler_params=pltpu.CompilerParams(
            dimension_semantics=("parallel", "arbitrary"),
            vmem_limit_bytes=vmem_limit),
    )(m1, m2)

    return iou[:, 0]


@functools.partial(jax.jit, static_argnames=("reduction",))
def _mask_iou_loss_impl(mask1, mask2, esp, loss_weight, reduction):
    iou = mask_iou_pallas(mask1, mask2)                     # [B] f32
    valid = iou > esp                                       # NaN -> False, like PyTorch
    num_valid = jnp.sum(valid.astype(jnp.int32))
    # -log only on valid entries (guard against log of NaN / non-positive).
    safe_iou = jnp.where(valid, iou, 1.0)
    total = jnp.sum(jnp.where(valid, -jnp.log(safe_iou), 0.0))
    if reduction == "mean":
        loss = total / jnp.maximum(num_valid, 1).astype(jnp.float32)
    else:
        loss = total
    loss = jnp.where(num_valid == 0, 0.0, loss) * loss_weight
    return loss, valid.astype(jnp.int32)


class MaskIOULoss:
    """JAX/Pallas port of the PyTorch MaskIOULoss (loss_type='iou', result_mode='b11')."""

    def __init__(self, loss_type="iou", reduction="mean", result_mode="b11",
                 esp=1e-07, loss_weight=1.0):
        if reduction.lower() == "mean":
            self.reduction = "mean"
        elif reduction.lower() == "sum":
            self.reduction = "sum"
        else:
            raise ValueError("An unknown reduction method is assigned in IOULoss!")
        self.esp = esp
        self.loss_weight = loss_weight
        # No learnable parameters in this module.

    def __call__(self, mask1: jax.Array, mask2: jax.Array):
        assert mask1.ndim == 3 and mask2.ndim == 3 and mask1.shape == mask2.shape
        # TODO(synk): PyTorch returns valid_entries.int().tolist(); we return the
        # int32 device array and let the caller do the host conversion.
        return _mask_iou_loss_impl(mask1, mask2, self.esp, self.loss_weight,
                                   reduction=self.reduction)


if __name__ == "__main__":
    key = jax.random.PRNGKey(0)
    k1, k2, k3, k4 = jax.random.split(key, 4)

    # Soft masks in [0, 1], as produced by a sigmoid head.
    B, N, M = 2, 16, 16
    mask1 = jax.random.uniform(k1, (B, N, M), dtype=jnp.float32)
    mask2 = (jax.random.uniform(k2, (B, N, M), dtype=jnp.float32) > 0.5).astype(jnp.float32)

    loss_fn = MaskIOULoss(loss_type="iou", reduction="mean", esp=1e-7, loss_weight=1.0)
    loss, valid = loss_fn(mask1, mask2)
    loss = jax.block_until_ready(loss)
    valid_list = [int(v) for v in jax.device_get(valid)]   # mirrors .int().tolist()
    _ = valid_list

    # Pure-JAX reference for the IoU hot path.
    def iou_ref_jax(a, b):
        bsz = a.shape[0]
        a1 = jnp.sum(a.reshape(bsz, -1), axis=1)
        a2 = jnp.sum(b.reshape(bsz, -1), axis=1)
        it = jnp.sum((a * b).reshape(bsz, -1), axis=1)
        return it / (a1 + a2 - it)

    iou_ker = mask_iou_pallas(mask1, mask2)
    assert jnp.allclose(iou_ker, iou_ref_jax(mask1, mask2), rtol=1e-5, atol=1e-6)
    assert jnp.isfinite(loss)

    # Chunked-reduction path: NM=960 (not a multiple of 128) + tiny budget forces
    # tk=128 with the in-kernel tail lane-mask; B=5 exercises a bt == B (< 8) tile.
    m1b = jax.random.uniform(k3, (5, 24, 40), dtype=jnp.float32)
    m2b = (jax.random.uniform(k4, (5, 24, 40), dtype=jnp.float32) > 0.5).astype(jnp.float32)
    iou_b = jax.block_until_ready(mask_iou_pallas(m1b, m2b, vmem_budget_bytes=16 * 1024))
    assert jnp.allclose(iou_b, iou_ref_jax(m1b, m2b), rtol=1e-5, atol=1e-6)

    # Multi-block batch path (grid[0] >= 2, partial last batch block, no pad copy).
    k5, k6 = jax.random.split(k3)
    m1c = jax.random.uniform(k5, (20, 16, 16), dtype=jnp.float32)
    m2c = (jax.random.uniform(k6, (20, 16, 16), dtype=jnp.float32) > 0.5).astype(jnp.float32)
    iou_c = jax.block_until_ready(mask_iou_pallas(m1c, m2c))
    assert jnp.allclose(iou_c, iou_ref_jax(m1c, m2c), rtol=1e-5, atol=1e-6)

    print("KERNEL_OK")
</pallas_src>

<mosaic_0001>
module attributes {stable_mosaic.version = 11 : i64} {
  func.func @kernel(%arg0: i32, %arg1: i32, %arg2: memref<2x256xf32, #tpu.memory_space<vmem>>, %arg3: memref<2x256xf32, #tpu.memory_space<vmem>>, %arg4: memref<2x1xf32, #tpu.memory_space<vmem>>, %arg5: memref<2x1xf32, #tpu.memory_space<vmem>>, %arg6: memref<2x1xf32, #tpu.memory_space<vmem>>) attributes {dimension_semantics = [#tpu.dimension_semantics<parallel>, #tpu.dimension_semantics<arbitrary>], iteration_bounds = array<i64: 1, 1>, scalar_prefetch = 0 : i64, scratch_operands = 2 : i64, tpu.core_type = #tpu.core_type<tc>, window_params = [{transform_indices = @transform_0, window_bounds = array<i64: 2, 256>}, {transform_indices = @transform_1, window_bounds = array<i64: 2, 256>}, {transform_indices = @transform_2, window_bounds = array<i64: 2, 1>}]} {
    %c0_i32 = arith.constant 0 : i32
    %0 = arith.cmpi eq, %arg1, %c0_i32 : i32
    %1 = arith.extui %0 : i1 to i32
    %c0_i32_0 = arith.constant 0 : i32
    %2 = arith.cmpi ne, %1, %c0_i32_0 : i32
    scf.if %2 {
      %cst_15 = arith.constant 0.000000e+00 : f32
      %20 = vector.broadcast %cst_15 : f32 to vector<2x1xf32>
      %c0_16 = arith.constant 0 : index
      %c0_17 = arith.constant 0 : index
      %21 = vector.load %arg5[%c0_16, %c0_17] : memref<2x1xf32, #tpu.memory_space<vmem>>, vector<2x1xf32>
      tpu.vector_store %arg5[%c0_16, %c0_17], %20 {strides = array<i32>} : memref<2x1xf32, #tpu.memory_space<vmem>>, vector<2x1xf32>,
      %cst_18 = arith.constant 0.000000e+00 : f32
      %22 = vector.broadcast %cst_18 : f32 to vector<2x1xf32>
      %c0_19 = arith.constant 0 : index
      %c0_20 = arith.constant 0 : index
      %23 = vector.load %arg6[%c0_19, %c0_20] : memref<2x1xf32, #tpu.memory_space<vmem>>, vector<2x1xf32>
      tpu.vector_store %arg6[%c0_19, %c0_20], %22 {strides = array<i32>} : memref<2x1xf32, #tpu.memory_space<vmem>>, vector<2x1xf32>,
    } else {
    }
    %c0 = arith.constant 0 : index
    %c0_1 = arith.constant 0 : index
    %3 = vector.load %arg2[%c0, %c0_1] : memref<2x256xf32, #tpu.memory_space<vmem>>, vector<2x256xf32>
    %c0_2 = arith.constant 0 : index
    %c0_3 = arith.constant 0 : index
    %4 = vector.load %arg3[%c0_2, %c0_3] : memref<2x256xf32, #tpu.memory_space<vmem>>, vector<2x256xf32>
    %c0_4 = arith.constant 0 : index
    %c0_5 = arith.constant 0 : index
    %5 = vector.load %arg5[%c0_4, %c0_5] : memref<2x1xf32, #tpu.memory_space<vmem>>, vector<2x1xf32>
    %6 = arith.addf %3, %4 : vector<2x256xf32>
    %cst = arith.constant dense<0.000000e+00> : vector<2xf32>
    %7 = vector.multi_reduction <add>, %6, %cst [1] : vector<2x256xf32> to vector<2xf32>
    %8 = vector.shape_cast %7 : vector<2xf32> to vector<2x1xf32>
    %9 = arith.addf %5, %8 : vector<2x1xf32>
    %c0_6 = arith.constant 0 : index
    %c0_7 = arith.constant 0 : index
    %10 = vector.load %arg5[%c0_6, %c0_7] : memref<2x1xf32, #tpu.memory_space<vmem>>, vector<2x1xf32>
    tpu.vector_store %arg5[%c0_6, %c0_7], %9 {strides = array<i32>} : memref<2x1xf32, #tpu.memory_space<vmem>>, vector<2x1xf32>,
    %c0_8 = arith.constant 0 : index
    %c0_9 = arith.constant 0 : index
    %11 = vector.load %arg6[%c0_8, %c0_9] : memref<2x1xf32, #tpu.memory_space<vmem>>, vector<2x1xf32>
    %12 = arith.mulf %3, %4 : vector<2x256xf32>
    %cst_10 = arith.constant dense<0.000000e+00> : vector<2xf32>
    %13 = vector.multi_reduction <add>, %12, %cst_10 [1] : vector<2x256xf32> to vector<2xf32>
    %14 = vector.shape_cast %13 : vector<2xf32> to vector<2x1xf32>
    %15 = arith.addf %11, %14 : vector<2x1xf32>
    %c0_11 = arith.constant 0 : index
    %c0_12 = arith.constant 0 : index
    %16 = vector.load %arg6[%c0_11, %c0_12] : memref<2x1xf32, #tpu.memory_space<vmem>>, vector<2x1xf32>
    tpu.vector_store %arg6[%c0_11, %c0_12], %15 {strides = array<i32>} : memref<2x1xf32, #tpu.memory_space<vmem>>, vector<2x1xf32>,
    %c0_i32_13 = arith.constant 0 : i32
    %17 = arith.cmpi eq, %arg1, %c0_i32_13 : i32
    %18 = arith.extui %17 : i1 to i32
    %c0_i32_14 = arith.constant 0 : i32
    %19 = arith.cmpi ne, %18, %c0_i32_14 : i32
    scf.if %19 {
      %c0_15 = arith.constant 0 : index
      %c0_16 = arith.constant 0 : index
      %20 = vector.load %arg6[%c0_15, %c0_16] : memref<2x1xf32, #tpu.memory_space<vmem>>, vector<2x1xf32>
      %c0_17 = arith.constant 0 : index
      %c0_18 = arith.constant 0 : index
      %21 = vector.load %arg5[%c0_17, %c0_18] : memref<2x1xf32, #tpu.memory_space<vmem>>, vector<2x1xf32>
      %22 = arith.subf %21, %20 : vector<2x1xf32>
      %23 = arith.divf %20, %22 : vector<2x1xf32>
      %c0_19 = arith.constant 0 : index
      %c0_20 = arith.constant 0 : index
      %24 = vector.load %arg4[%c0_19, %c0_20] : memref<2x1xf32, #tpu.memory_space<vmem>>, vector<2x1xf32>
      tpu.vector_store %arg4[%c0_19, %c0_20], %23 {strides = array<i32>} : memref<2x1xf32, #tpu.memory_space<vmem>>, vector<2x1xf32>,
    } else {
    }
    return
  }
  func.func @transform_0(%arg0: i32, %arg1: i32) -> (i32, i32) {
    %c0_i32 = arith.constant 0 : i32
    return %arg0, %arg1 : i32, i32
  }
  func.func @transform_1(%arg0: i32, %arg1: i32) -> (i32, i32) {
    %c0_i32 = arith.constant 0 : i32
    return %arg0, %arg1 : i32, i32
  }
  func.func @transform_2(%arg0: i32, %arg1: i32) -> (i32, i32) {
    %c0_i32 = arith.constant 0 : i32
    %c0_i32_0 = arith.constant 0 : i32
    return %arg0, %c0_i32 : i32, i32
  }
}

</mosaic_0001>

<llo_original>
// kernel: _mask_iou_loss_impl.1
$region0: #{_mask_iou_loss_impl.1}
  #allocation0 [shape = 'u32[]', space=smem, size = 0x4, offset = 0x4, fixed_abs, tag = 'smem constant byte address 0x4 - core index']
  #allocation1 [shape = 'u32[72,128]{1,0:T(1,128)}', space=vmem, size = 0x9000, scoped, tag = 'internal scratch']
  #allocation2 [shape = 'f32[2,1]{1,0:T(2,128)}', space=vmem, size = 0x400, scoped, tag = 'scratch operand']
  #allocation3 [shape = 'f32[2,1]{1,0:T(2,128)}', space=vmem, size = 0x400, scoped, tag = 'scratch operand']
  %s0 = inlined_call_operand.vmem [shape: f32[2,256], index: 0, kind: input, shape index: {}]
  %s1 = inlined_call_operand.vmem [shape: f32[2,256], index: 1, kind: input, shape index: {}]
  %s2 = inlined_call_operand.vmem [shape: f32[2,1], index: 2, kind: output, shape index: {}]
  %s3 = sld [smem:[#allocation0]]
  $region26: #{_mask_iou_loss_impl.1} parent=0
    _
  %s5 = ssub.s32 1, %s3
  %s6 = scalar_select 0, %s5, %s3
  // Predicated region
  $region2: #{_mask_iou_loss_impl.1} parent=0 // pred_check
    _
  $region3: #{_mask_iou_loss_impl.1} parent=0 // pred_check_branch
    %8 = sbr.rel (0) target = $region5
  $region4: #{_mask_iou_loss_impl.1} parent=0 // pred_region
    _
  $region5: #{_mask_iou_loss_impl.1} parent=0 // pred_fallthru
    _
  // Predicated region
  $region6: #{_mask_iou_loss_impl.1} parent=0 // pred_check
    _
  $region7: #{_mask_iou_loss_impl.1} parent=0 // pred_check_branch
    %10 = sbr.rel (0) target = $region9
  $region8: #{_mask_iou_loss_impl.1} parent=0 // pred_region
    _
  $region9: #{_mask_iou_loss_impl.1} parent=0 // pred_fallthru
    _
  %p11 = scmp.eq.s32.totalorder 0, 0
  // Predicated region
  $region10: #{_mask_iou_loss_impl.1} parent=0 // pred_check
    %p12 = pneg %p11
  $region11: #{_mask_iou_loss_impl.1} parent=0 // pred_check_branch
    %14 = sbr.rel (%p12) target = $region13
  $region12: #{_mask_iou_loss_impl.1} parent=0 // pred_region
    %vm15 = vcmask 1024
    %16 = vst.msk [vmem:[#allocation2] sm:$0x3] %vm15, 0.0
    %17 = vst.msk [vmem:[#allocation3] sm:$0x3] %vm15, 0.0
  $region13: #{_mask_iou_loss_impl.1} parent=0 // pred_fallthru
    _
  %v18 = vld [vmem:[%s0] sm:$0xf]
  %v19 = vld [vmem:[%s1] sm:$0xf]
  %v20 = vld [vmem:[#allocation2] sm:$0x3]
  %v21 = vadd.f32 %v18, %v19
  %23 = vst [vmem:[#allocation1] ss:$4 sm:$0xff] %v21
  %v24 = vld.sshfl [vmem:[#allocation1] sm:$0xff pattern:$0x73625140]
  %v25 = vld.sshfl [vmem:[#allocation1 + $0x8] sm:$0xff pattern:$0x73625140]
  %vm28 = vcmask 1041408
  %v29 = vsel %vm28, %v24, 0.0
  %v30 = vsel %vm28, %v25, 0.0
  %v31 = vadd.f32 %v29, %v30
  %32 = vadd.xlane.f32.xlu0 %v31
  %v33 = vpop.xlane.xlu0 %32
  %v34 = vadd.f32 %v20, %v33
  %vm35 = vcmask 1024
  %36 = vst.msk [vmem:[#allocation2] sm:$0x3] %vm35, %v34
  %v37 = vld [vmem:[#allocation3] sm:$0x3]
  %v38 = vmul.f32 %v18, %v19
  %40 = vst [vmem:[#allocation1] ss:$4 sm:$0xff] %v38
  %v41 = vld.sshfl [vmem:[#allocation1] sm:$0xff pattern:$0x73625140]
  %v42 = vld.sshfl [vmem:[#allocation1 + $0x8] sm:$0xff pattern:$0x73625140]
  %v45 = vsel %vm28, %v41, 0.0
  %v46 = vsel %vm28, %v42, 0.0
  %v47 = vadd.f32 %v45, %v46
  %48 = vadd.xlane.f32.xlu0 %v47
  %v49 = vpop.xlane.xlu0 %48
  %v50 = vadd.f32 %v37, %v49
  %51 = vst.msk [vmem:[#allocation3] sm:$0x3] %vm35, %v50
  // Predicated region
  $region14: #{_mask_iou_loss_impl.1} parent=0 // pred_check
    %p52 = pneg %p11
  $region15: #{_mask_iou_loss_impl.1} parent=0 // pred_check_branch
    %54 = sbr.rel (%p52) target = $region17
  $region16: #{_mask_iou_loss_impl.1} parent=0 // pred_region
    %v55 = vld [vmem:[#allocation3] sm:$0x3]
    %v56 = vld [vmem:[#allocation2] sm:$0x3]
    %v57 = vsub.f32 %v56, %v55
    %v58 = vrcp.pop %v57
    %v59 = vmul.f32 %v57, %v58
    %v60 = vsub.f32 1.0, %v59
    %v61 = vmul.f32 %v58, %v60
    %v62 = vadd.f32 %v58, %v61
    %vm63 = vweird.f32 %v57
    %vm64 = vweird.f32 %v58
    %vm65 = vmor %vm63, %vm64
    %v66 = vsel %vm65, %v58, %v62
    %v67 = vand.u32 2147483647, %v57
    %vm68 = vcmp.eq.f32.partialorder %v67, 8.507059e+37
    %v69 = vand.u32 %v57, 2147483648
    %v70 = vor.u32 1.1754944e-38, %v69
    %v71 = vsel %vm68, %v70, %v66
    %v72 = vmul.f32 %v55, %v71
    %73 = vst.msk [vmem:[%s2] sm:$0x3] %vm35, %v72
  $region17: #{_mask_iou_loss_impl.1} parent=0 // pred_fallthru
    _
  // Predicated region
  $region18: #{_mask_iou_loss_impl.1} parent=0 // pred_check
    _
  $region19: #{_mask_iou_loss_impl.1} parent=0 // pred_check_branch
    %75 = sbr.rel (0) target = $region21
  $region20: #{_mask_iou_loss_impl.1} parent=0 // pred_region
    _
  $region21: #{_mask_iou_loss_impl.1} parent=0 // pred_fallthru
    _
  // Predicated region
  $region22: #{_mask_iou_loss_impl.1} parent=0 // pred_check
    _
  $region23: #{_mask_iou_loss_impl.1} parent=0 // pred_check_branch
    %77 = sbr.rel (0) target = $region25
  $region24: #{_mask_iou_loss_impl.1} parent=0 // pred_region
    _
  $region25: #{_mask_iou_loss_impl.1} parent=0 // pred_fallthru
    _

</llo_original>
